<compile_context>
chip_gen: v6e
topology: v6e:2x2x1
jax: 0.10.0
libtpu: 0.0.40
codegen_flags: <defaults>
</compile_context>

<pallas_src>
import functools

import jax
import jax.numpy as jnp
from jax.experimental import pallas as pl
from jax.experimental.pallas import tpu as pltpu

KERNEL_SIZES = (2, 3, 4, 5, 6)   # conv2 .. conv6
KMAX = max(KERNEL_SIZES)
ONEHOT_VOCAB_LIMIT = 1024        # fuse the embedding in-kernel below this size


def _round_up(x, m):
    return (x + m - 1) // m * m


def cnn_multi_kernel(*refs, TB, L_pad, L, F, fused):
    """One batch tile: TB elements x L_pad time steps -> (TB, C_pad) logits."""
    if fused:
        ids_ref, tbl_ref, wp_ref, wd_ref, bd_ref, wo_ref, bo_ref, out_ref = refs
    else:
        x_ref, wp_ref, wd_ref, bd_ref, wo_ref, bo_ref, out_ref = refs
    N = TB * L_pad

    # ---- embedding --------------------------------------------------------
    if fused:
        # One-hot MXU gather (exact: each row selects a single table entry).
        ids = ids_ref[...]                                        # (N, 1) i32
        V = tbl_ref.shape[0]
        onehot = (jax.lax.broadcasted_iota(jnp.int32, (N, V), 1)
                  == ids).astype(tbl_ref.dtype)                   # (N, V) bf16
        x = jnp.dot(onehot, tbl_ref[...],
                    preferred_element_type=jnp.float32)           # (N, E) f32
    else:
        x = x_ref[...].astype(jnp.float32)                        # (N, E) f32

    # ---- im2col via XLU rolls (32-bit layout), materialized in bf16 -------
    # Tap j of row i is x[(i + j) mod N].  Wrapped / cross-element rows only
    # hit time positions t >= L_pad - j > L - k for every conv k that uses
    # tap j, and those are zeroed after ReLU below.  The trailing ones column
    # folds the conv biases (last row of the packed weight) into the matmul.
    taps = [x] + [pltpu.roll(x, shift=N - j, axis=0) for j in range(1, KMAX)]
    cols = jnp.concatenate(
        [t.astype(wp_ref.dtype) for t in taps]
        + [jnp.ones((N, 1), wp_ref.dtype)], axis=1)               # (N, KMAX*E+1)

    # ---- all five conv banks in one MXU matmul + ReLU ----------------------
    y = jnp.dot(cols, wp_ref[...], preferred_element_type=jnp.float32)
    y = jnp.maximum(y, 0.0)                                       # (N, 5F)
    NF = y.shape[-1]

    # ---- zero invalid time positions, global max-pool over time ------------
    # Valid output positions for conv k are t <= L - k; every valid value is
    # >= 0 post-ReLU, so zeroing the rest leaves the max unchanged.
    y3 = y.reshape(TB, L_pad, NF)          # layout-preserving (L_pad % 8 == 0)
    t_idx = jax.lax.broadcasted_iota(jnp.int32, (1, L_pad, NF), 1)
    lane = jax.lax.broadcasted_iota(jnp.int32, (1, L_pad, NF), 2)
    thr = jnp.full((1, L_pad, NF), L - KERNEL_SIZES[0], jnp.int32)
    for g, k in enumerate(KERNEL_SIZES[1:], start=1):
        thr = jnp.where(lane >= g * F, L - k, thr)
    y3 = y3 * (t_idx <= thr).astype(y3.dtype)
    feat = jnp.max(y3, axis=1)                                    # (TB, 5F)

    # ---- dense + ReLU, output layer ----------------------------------------
    # TODO(synk): Dropout(0.5) layers are identity here (inference semantics).
    h = jnp.dot(feat.astype(wd_ref.dtype), wd_ref[...],
                preferred_element_type=jnp.float32) + bd_ref[...]
    h = jnp.maximum(h, 0.0)
    logits = jnp.dot(h.astype(wo_ref.dtype), wo_ref[...],
                     preferred_element_type=jnp.float32) + bo_ref[...]
    out_ref[...] = logits.astype(out_ref.dtype)                   # (TB, C_pad)


def _choose_batch_tile(B):
    # Tiny batches: one tile (block dim == full dim is always legal).
    if B <= 8:
        return B, B
    # Otherwise: >= 2 grid steps (v7x megacore), <= 512 rows/tile, multiple
    # of 8 so the (TB, C_pad) output block tiles cleanly.
    tb = min(512, _round_up(-(-B // 2), 8))
    return tb, _round_up(B, tb)


def cnn_multi_forward(ids, params):
    B, L = ids.shape
    tbl = params["embedding"].astype(jnp.bfloat16)                # (V, E)
    V, E = tbl.shape
    F = params["dense_b"].shape[-1]
    C = params["out_b"].shape[-1]

    L_pad = _round_up(L, 16)            # whole sublane tiles per batch element
    TB, B_pad = _choose_batch_tile(B)
    C_pad = _round_up(max(C, 128), 128)  # lane-dense logits output

    # Pack the five conv banks (+ folded biases) into one (KMAX*E+1, 5F)
    # weight: rows [j*E, (j+1)*E) hold tap j (zero rows for taps a smaller
    # kernel does not use); the last row holds the bias (it multiplies the
    # ones column of the im2col matrix).
    w_cols = []
    for k in KERNEL_SIZES:
        w, b = params["conv"][k]                                  # (k,E,F),(1,F)
        col = jnp.zeros((KMAX * E + 1, F), jnp.float32)
        col = col.at[:k * E, :].set(w.reshape(k * E, F))
        col = col.at[KMAX * E, :].set(b[0])
        w_cols.append(col)
    w_pack = jnp.concatenate(w_cols, axis=1).astype(jnp.bfloat16)  # (6E+1, 5F)

    wd = params["dense_w"].astype(jnp.bfloat16)                    # (5F, F)
    bd = params["dense_b"].astype(jnp.float32)                     # (1, F)
    wo = jnp.zeros((F, C_pad), jnp.float32).at[:, :C].set(
        params["out_w"]).astype(jnp.bfloat16)                      # (F, C_pad)
    bo = jnp.zeros((1, C_pad), jnp.float32).at[:, :C].set(params["out_b"])

    fused = V <= ONEHOT_VOCAB_LIMIT
    if fused:
        # Only ids travel through HBM per token (4 B vs 2*E B of embeddings);
        # the tiny table stays resident in VMEM across all grid steps.
        ids_p = jnp.pad(ids.astype(jnp.int32),
                        ((0, B_pad - B), (0, L_pad - L)))
        data = ids_p.reshape(B_pad * L_pad, 1)
        data_specs = [pl.BlockSpec((TB * L_pad, 1), lambda b: (b, 0)),
                      pl.BlockSpec(tbl.shape, lambda b: (0, 0))]
        data_ops = (data, tbl)
    else:
        # TODO(synk): very large vocabularies keep the gather in XLA glue.
        emb = jnp.pad(tbl[ids], ((0, B_pad - B), (0, L_pad - L), (0, 0)))
        data = emb.reshape(B_pad * L_pad, E)
        data_specs = [pl.BlockSpec((TB * L_pad, E), lambda b: (b, 0))]
        data_ops = (data,)

    def const_spec(a):
        # Whole-array weight blocks; constant index map => DMA'd only once.
        return pl.BlockSpec(a.shape, lambda b, _n=a.ndim: (0,) * _n)

    kernel = functools.partial(cnn_multi_kernel, TB=TB, L_pad=L_pad, L=L, F=F,
                               fused=fused)
    out = pl.pallas_call(
        kernel,
        out_shape=jax.ShapeDtypeStruct((B_pad, C_pad), jnp.float32),
        grid=(B_pad // TB,),
        in_specs=data_specs + [const_spec(a) for a in (w_pack, wd, bd, wo, bo)],
        out_specs=pl.BlockSpec((TB, C_pad), lambda b: (b, 0)),
        compiler_params=pltpu.CompilerParams(
            dimension_semantics=("parallel",),       # batch tiles independent
            vmem_limit_bytes=48 * 1024 * 1024),
    )(*data_ops, w_pack, wd, bd, wo, bo)
    return out[:B, :C]                                             # (B, C)


def make_params(key, max_index, embed_dim, num_filters, num_classes):
    keys = jax.random.split(key, 16)
    it = iter(keys)
    params = {}
    emb = 0.1 * jax.random.normal(next(it), (max_index, embed_dim), jnp.float32)
    emb = emb.at[0].set(0.0)                                      # padding_idx=0
    params["embedding"] = emb
    params["conv"] = {}
    for k in KERNEL_SIZES:
        w = 0.1 * jax.random.normal(next(it), (k, embed_dim, num_filters),
                                    jnp.float32)
        b = 0.1 * jax.random.normal(next(it), (1, num_filters), jnp.float32)
        params["conv"][k] = (w, b)
    params["dense_w"] = 0.1 * jax.random.normal(
        next(it), (num_filters * 5, num_filters), jnp.float32)
    params["dense_b"] = 0.1 * jax.random.normal(
        next(it), (1, num_filters), jnp.float32)
    params["out_w"] = 0.1 * jax.random.normal(
        next(it), (num_filters, num_classes), jnp.float32)
    params["out_b"] = 0.1 * jax.random.normal(
        next(it), (1, num_classes), jnp.float32)
    return params


def _bf16(x):
    return x.astype(jnp.bfloat16).astype(jnp.float32)


def reference_forward(ids, params):
    # Pure-JAX reference with matching numerics (bf16-rounded params, f32 math).
    emb = _bf16(params["embedding"])[ids]                          # (B, L, E)
    L = emb.shape[1]
    feats = []
    for k in KERNEL_SIZES:
        w, bias = params["conv"][k]
        w = _bf16(w)
        Lk = L - k + 1
        y = sum(jnp.einsum("ble,ef->blf", emb[:, j:j + Lk, :], w[j])
                for j in range(k)) + _bf16(bias)
        feats.append(jnp.max(jnp.maximum(y, 0.0), axis=1))
    feat = jnp.concatenate(feats, axis=1)
    h = jnp.maximum(_bf16(feat) @ _bf16(params["dense_w"])
                    + params["dense_b"], 0.0)
    return _bf16(h) @ _bf16(params["out_w"]) + params["out_b"]


if __name__ == "__main__":
    # Small shapes consistent with the module.
    B, L = 4, 16                    # batch, max_string_length
    MAX_INDEX = 64                  # vocabulary size
    EMBED_DIM = 16                  # embedding_dimension
    NUM_FILTERS = 32                # num_conv_filters
    NUM_CLASSES = 8

    key = jax.random.PRNGKey(0)
    k_ids, k_params = jax.random.split(key)
    ids = jax.random.randint(k_ids, (B, L), 0, MAX_INDEX, dtype=jnp.int32)
    params = make_params(k_params, MAX_INDEX, EMBED_DIM, NUM_FILTERS,
                         NUM_CLASSES)

    out = jax.block_until_ready(cnn_multi_forward(ids, params))
    ref = jax.block_until_ready(reference_forward(ids, params))
    assert out.shape == (B, NUM_CLASSES)
    assert jnp.allclose(out, ref, atol=1e-3, rtol=1e-3), (
        float(jnp.max(jnp.abs(out - ref))))
    print("KERNEL_OK")
</pallas_src>

<mosaic_0001>
module attributes {stable_mosaic.version = 11 : i64} {
  func.func @cnn_multi_kernel(%arg0: i32, %arg1: memref<64x1xi32, #tpu.memory_space<vmem>>, %arg2: memref<64x16xbf16, #tpu.memory_space<vmem>>, %arg3: memref<97x160xbf16, #tpu.memory_space<vmem>>, %arg4: memref<160x32xbf16, #tpu.memory_space<vmem>>, %arg5: memref<1x32xf32, #tpu.memory_space<vmem>>, %arg6: memref<32x128xbf16, #tpu.memory_space<vmem>>, %arg7: memref<1x128xf32, #tpu.memory_space<vmem>>, %arg8: memref<4x128xf32, #tpu.memory_space<vmem>>) attributes {dimension_semantics = [#tpu.dimension_semantics<parallel>], iteration_bounds = array<i64: 1>, scalar_prefetch = 0 : i64, scratch_operands = 0 : i64, tpu.core_type = #tpu.core_type<tc>, window_params = [{transform_indices = @transform_0, window_bounds = array<i64: 64, 1>}, {pipeline_mode = #tpu.pipeline_mode<synchronous>, transform_indices = @transform_1, window_bounds = array<i64: 64, 16>}, {pipeline_mode = #tpu.pipeline_mode<synchronous>, transform_indices = @transform_2, window_bounds = array<i64: 97, 160>}, {pipeline_mode = #tpu.pipeline_mode<synchronous>, transform_indices = @transform_3, window_bounds = array<i64: 160, 32>}, {pipeline_mode = #tpu.pipeline_mode<synchronous>, transform_indices = @transform_4, window_bounds = array<i64: 1, 32>}, {pipeline_mode = #tpu.pipeline_mode<synchronous>, transform_indices = @transform_5, window_bounds = array<i64: 32, 128>}, {pipeline_mode = #tpu.pipeline_mode<synchronous>, transform_indices = @transform_6, window_bounds = array<i64: 1, 128>}, {transform_indices = @transform_7, window_bounds = array<i64: 4, 128>}]} {
    %c0 = arith.constant 0 : index
    %c0_0 = arith.constant 0 : index
    %0 = vector.load %arg1[%c0, %c0_0] : memref<64x1xi32, #tpu.memory_space<vmem>>, vector<64x1xi32>
    %1 = tpu.iota {dimensions = array<i32: 1>} : vector<64x64xi32>
    %2 = vector.broadcast %0 : vector<64x1xi32> to vector<64x64xi32>
    %3 = arith.cmpi eq, %1, %2 : vector<64x64xi32>
    %4 = arith.extui %3 : vector<64x64xi1> to vector<64x64xi32>
    %5 = arith.sitofp %4 : vector<64x64xi32> to vector<64x64xf32>
    %6 = arith.truncf %5 : vector<64x64xf32> to vector<64x64xbf16>
    %c0_1 = arith.constant 0 : index
    %c0_2 = arith.constant 0 : index
    %7 = vector.load %arg2[%c0_1, %c0_2] : memref<64x16xbf16, #tpu.memory_space<vmem>>, vector<64x16xbf16>
    %cst = arith.constant dense<0.000000e+00> : vector<64x16xf32>
    %8 = tpu.matmul %6, %7, %cst {dimension_numbers = #tpu.dot_dimension_numbers<[1], [0], [0], [1], [0, 0, 1, 1], [], []>} : vector<64x64xbf16>, vector<64x16xbf16>, vector<64x16xf32> -> vector<64x16xf32>
    %c63_i32 = arith.constant 63 : i32
    %9 = tpu.dynamic_rotate %8 by %c63_i32 dim 0 : vector<64x16xf32>, i32 -> vector<64x16xf32>
    %c62_i32 = arith.constant 62 : i32
    %10 = tpu.dynamic_rotate %8 by %c62_i32 dim 0 : vector<64x16xf32>, i32 -> vector<64x16xf32>
    %c61_i32 = arith.constant 61 : i32
    %11 = tpu.dynamic_rotate %8 by %c61_i32 dim 0 : vector<64x16xf32>, i32 -> vector<64x16xf32>
    %c60_i32 = arith.constant 60 : i32
    %12 = tpu.dynamic_rotate %8 by %c60_i32 dim 0 : vector<64x16xf32>, i32 -> vector<64x16xf32>
    %c59_i32 = arith.constant 59 : i32
    %13 = tpu.dynamic_rotate %8 by %c59_i32 dim 0 : vector<64x16xf32>, i32 -> vector<64x16xf32>
    %14 = arith.truncf %8 : vector<64x16xf32> to vector<64x16xbf16>
    %15 = arith.truncf %9 : vector<64x16xf32> to vector<64x16xbf16>
    %16 = arith.truncf %10 : vector<64x16xf32> to vector<64x16xbf16>
    %17 = arith.truncf %11 : vector<64x16xf32> to vector<64x16xbf16>
    %18 = arith.truncf %12 : vector<64x16xf32> to vector<64x16xbf16>
    %19 = arith.truncf %13 : vector<64x16xf32> to vector<64x16xbf16>
    %cst_3 = arith.constant 1.000000e+00 : bf16
    %20 = vector.broadcast %cst_3 : bf16 to vector<64x1xbf16>
    %21 = tpu.concatenate %14, %15, %16, %17, %18, %19, %20 in 1 : vector<64x16xbf16>, vector<64x16xbf16>, vector<64x16xbf16>, vector<64x16xbf16>, vector<64x16xbf16>, vector<64x16xbf16>, vector<64x1xbf16> -> vector<64x97xbf16>
    %c0_4 = arith.constant 0 : index
    %c0_5 = arith.constant 0 : index
    %22 = vector.load %arg3[%c0_4, %c0_5] : memref<97x160xbf16, #tpu.memory_space<vmem>>, vector<97x160xbf16>
    %cst_6 = arith.constant dense<0.000000e+00> : vector<64x160xf32>
    %23 = tpu.matmul %21, %22, %cst_6 {dimension_numbers = #tpu.dot_dimension_numbers<[1], [0], [0], [1], [0, 0, 1, 1], [], []>} : vector<64x97xbf16>, vector<97x160xbf16>, vector<64x160xf32> -> vector<64x160xf32>
    %cst_7 = arith.constant 0.000000e+00 : f32
    %24 = vector.broadcast %cst_7 : f32 to vector<64x160xf32>
    %25 = arith.maximumf %23, %24 : vector<64x160xf32>
    %26 = vector.shape_cast %25 : vector<64x160xf32> to vector<4x16x160xf32>
    %27 = tpu.iota {dimensions = array<i32: 1>} : vector<1x16x160xi32>
    %28 = tpu.iota {dimensions = array<i32: 2>} : vector<1x16x160xi32>
    %c14_i32 = arith.constant 14 : i32
    %29 = vector.broadcast %c14_i32 : i32 to vector<1x16x160xi32>
    %c32_i32 = arith.constant 32 : i32
    %30 = vector.broadcast %c32_i32 : i32 to vector<1x16x160xi32>
    %31 = arith.cmpi sge, %28, %30 : vector<1x16x160xi32>
    %c13_i32 = arith.constant 13 : i32
    %32 = vector.broadcast %c13_i32 : i32 to vector<1x16x160xi32>
    %33 = arith.select %31, %32, %29 : vector<1x16x160xi1>, vector<1x16x160xi32>
    %c64_i32 = arith.constant 64 : i32
    %34 = vector.broadcast %c64_i32 : i32 to vector<1x16x160xi32>
    %35 = arith.cmpi sge, %28, %34 : vector<1x16x160xi32>
    %c12_i32 = arith.constant 12 : i32
    %36 = vector.broadcast %c12_i32 : i32 to vector<1x16x160xi32>
    %37 = arith.select %35, %36, %33 : vector<1x16x160xi1>, vector<1x16x160xi32>
    %c96_i32 = arith.constant 96 : i32
    %38 = vector.broadcast %c96_i32 : i32 to vector<1x16x160xi32>
    %39 = arith.cmpi sge, %28, %38 : vector<1x16x160xi32>
    %c11_i32 = arith.constant 11 : i32
    %40 = vector.broadcast %c11_i32 : i32 to vector<1x16x160xi32>
    %41 = arith.select %39, %40, %37 : vector<1x16x160xi1>, vector<1x16x160xi32>
    %c128_i32 = arith.constant 128 : i32
    %42 = vector.broadcast %c128_i32 : i32 to vector<1x16x160xi32>
    %43 = arith.cmpi sge, %28, %42 : vector<1x16x160xi32>
    %c10_i32 = arith.constant 10 : i32
    %44 = vector.broadcast %c10_i32 : i32 to vector<1x16x160xi32>
    %45 = arith.select %43, %44, %41 : vector<1x16x160xi1>, vector<1x16x160xi32>
    %46 = arith.cmpi sle, %27, %45 : vector<1x16x160xi32>
    %47 = arith.extui %46 : vector<1x16x160xi1> to vector<1x16x160xi32>
    %48 = arith.sitofp %47 : vector<1x16x160xi32> to vector<1x16x160xf32>
    %49 = vector.broadcast %48 : vector<1x16x160xf32> to vector<4x16x160xf32>
    %50 = arith.mulf %26, %49 : vector<4x16x160xf32>
    %cst_8 = arith.constant dense<0xFF800000> : vector<4x160xf32>
    %51 = vector.multi_reduction <maximumf>, %50, %cst_8 [1] : vector<4x16x160xf32> to vector<4x160xf32>
    %52 = arith.truncf %51 : vector<4x160xf32> to vector<4x160xbf16>
    %c0_9 = arith.constant 0 : index
    %c0_10 = arith.constant 0 : index
    %53 = vector.load %arg4[%c0_9, %c0_10] : memref<160x32xbf16, #tpu.memory_space<vmem>>, vector<160x32xbf16>
    %cst_11 = arith.constant dense<0.000000e+00> : vector<4x32xf32>
    %54 = tpu.matmul %52, %53, %cst_11 {dimension_numbers = #tpu.dot_dimension_numbers<[1], [0], [0], [1], [0, 0, 1, 1], [], []>} : vector<4x160xbf16>, vector<160x32xbf16>, vector<4x32xf32> -> vector<4x32xf32>
    %c0_12 = arith.constant 0 : index
    %c0_13 = arith.constant 0 : index
    %55 = vector.load %arg5[%c0_12, %c0_13] : memref<1x32xf32, #tpu.memory_space<vmem>>, vector<1x32xf32>
    %56 = vector.broadcast %55 : vector<1x32xf32> to vector<4x32xf32>
    %57 = arith.addf %54, %56 : vector<4x32xf32>
    %cst_14 = arith.constant 0.000000e+00 : f32
    %58 = vector.broadcast %cst_14 : f32 to vector<4x32xf32>
    %59 = arith.maximumf %57, %58 : vector<4x32xf32>
    %60 = arith.truncf %59 : vector<4x32xf32> to vector<4x32xbf16>
    %c0_15 = arith.constant 0 : index
    %c0_16 = arith.constant 0 : index
    %61 = vector.load %arg6[%c0_15, %c0_16] : memref<32x128xbf16, #tpu.memory_space<vmem>>, vector<32x128xbf16>
    %cst_17 = arith.constant dense<0.000000e+00> : vector<4x128xf32>
    %62 = tpu.matmul %60, %61, %cst_17 {dimension_numbers = #tpu.dot_dimension_numbers<[1], [0], [0], [1], [0, 0, 1, 1], [], []>} : vector<4x32xbf16>, vector<32x128xbf16>, vector<4x128xf32> -> vector<4x128xf32>
    %c0_18 = arith.constant 0 : index
    %c0_19 = arith.constant 0 : index
    %63 = vector.load %arg7[%c0_18, %c0_19] : memref<1x128xf32, #tpu.memory_space<vmem>>, vector<1x128xf32>
    %64 = vector.broadcast %63 : vector<1x128xf32> to vector<4x128xf32>
    %65 = arith.addf %62, %64 : vector<4x128xf32>
    %c0_20 = arith.constant 0 : index
    %c0_21 = arith.constant 0 : index
    %66 = vector.load %arg8[%c0_20, %c0_21] : memref<4x128xf32, #tpu.memory_space<vmem>>, vector<4x128xf32>
    tpu.vector_store %arg8[%c0_20, %c0_21], %65 {strides = array<i32>} : memref<4x128xf32, #tpu.memory_space<vmem>>, vector<4x128xf32>,
    return
  }
  func.func @transform_0(%arg0: i32) -> (i32, i32) {
    %c0_i32 = arith.constant 0 : i32
    %c0_i32_0 = arith.constant 0 : i32
    return %arg0, %c0_i32 : i32, i32
  }
  func.func @transform_1(%arg0: i32) -> (i32, i32) {
    %c0_i32 = arith.constant 0 : i32
    %c0_i32_0 = arith.constant 0 : i32
    %c0_i32_1 = arith.constant 0 : i32
    return %c0_i32, %c0_i32_0 : i32, i32
  }
  func.func @transform_2(%arg0: i32) -> (i32, i32) {
    %c0_i32 = arith.constant 0 : i32
    %c0_i32_0 = arith.constant 0 : i32
    %c0_i32_1 = arith.constant 0 : i32
    return %c0_i32, %c0_i32_0 : i32, i32
  }
  func.func @transform_3(%arg0: i32) -> (i32, i32) {
    %c0_i32 = arith.constant 0 : i32
    %c0_i32_0 = arith.constant 0 : i32
    %c0_i32_1 = arith.constant 0 : i32
    return %c0_i32, %c0_i32_0 : i32, i32
  }
  func.func @transform_4(%arg0: i32) -> (i32, i32) {
    %c0_i32 = arith.constant 0 : i32
    %c0_i32_0 = arith.constant 0 : i32
    %c0_i32_1 = arith.constant 0 : i32
    return %c0_i32, %c0_i32_0 : i32, i32
  }
  func.func @transform_5(%arg0: i32) -> (i32, i32) {
    %c0_i32 = arith.constant 0 : i32
    %c0_i32_0 = arith.constant 0 : i32
    %c0_i32_1 = arith.constant 0 : i32
    return %c0_i32, %c0_i32_0 : i32, i32
  }
  func.func @transform_6(%arg0: i32) -> (i32, i32) {
    %c0_i32 = arith.constant 0 : i32
    %c0_i32_0 = arith.constant 0 : i32
    %c0_i32_1 = arith.constant 0 : i32
    return %c0_i32, %c0_i32_0 : i32, i32
  }
  func.func @transform_7(%arg0: i32) -> (i32, i32) {
    %c0_i32 = arith.constant 0 : i32
    %c0_i32_0 = arith.constant 0 : i32
    return %arg0, %c0_i32 : i32, i32
  }
}

</mosaic_0001>

<llo_original>
// kernel: tpu_custom_call.1
$region0: #{tpu_custom_call.1}
  #allocation0 [shape = 'u32[]', space=smem, size = 0x4, offset = 0x4, fixed_abs, tag = 'smem constant byte address 0x4 - core index']
  #allocation1 [shape = 'u32[144,128]{1,0:T(1,128)}', space=vmem, size = 0x12000, scoped, tag = 'internal scratch']
  %s0 = inlined_call_operand.vmem [shape: s32[64,1], index: 0, kind: input, shape index: {}]
  %s1 = inlined_call_operand.vmem [shape: bf16[64,16], index: 1, kind: input, shape index: {}]
  %s2 = inlined_call_operand.vmem [shape: bf16[97,160], index: 2, kind: input, shape index: {}]
  %s3 = inlined_call_operand.vmem [shape: bf16[160,32], index: 3, kind: input, shape index: {}]
  %s4 = inlined_call_operand.vmem [shape: f32[1,32], index: 4, kind: input, shape index: {}]
  %s5 = inlined_call_operand.vmem [shape: bf16[32,128], index: 5, kind: input, shape index: {}]
  %s6 = inlined_call_operand.vmem [shape: f32[1,128], index: 6, kind: input, shape index: {}]
  %s7 = inlined_call_operand.hbm [shape: f32[4,128], index: 7, kind: output, shape index: {}]
  %s8 = sld [smem:[#allocation0]]
  $region38: #{tpu_custom_call.1} parent=0
    _
  %s10 = ssub.s32 1, %s8
  %s11 = scalar_select 0, %s10, %s8
  $region1: #{tpu_custom_call.1} parent=0
    #allocation2 [shape = 'u8[2048]{0}', space=vmem, size = 0x800, scoped, tag = 'output window, operand 0, single buffered']
    #allocation3 [shape = 's32[1]{0}', space=sflag, size = 0x4, scoped, tag = 'scoped memory for tpu_custom_call.1']
    %12 = vsyncpa [#allocation3], 0
    // Predicated region
    $region2: #{tpu_custom_call.1} parent=1 // pred_check
      _
    $region3: #{tpu_custom_call.1} parent=1 // pred_check_branch
      %14 = sbr.rel (0) target = $region5
    $region4: #{tpu_custom_call.1} parent=1 // pred_region
      _
    $region5: #{tpu_custom_call.1} parent=1 // pred_fallthru
      _
    // Predicated region
    $region6: #{tpu_custom_call.1} parent=1 // pred_check
      _
    $region7: #{tpu_custom_call.1} parent=1 // pred_check_branch
      %16 = sbr.rel (0) target = $region9
    $region8: #{tpu_custom_call.1} parent=1 // pred_region
      _
    $region9: #{tpu_custom_call.1} parent=1 // pred_fallthru
      _
    // Predicated region
    $region10: #{tpu_custom_call.1} parent=1 // pred_check
      _
    $region11: #{tpu_custom_call.1} parent=1 // pred_check_branch
      %18 = sbr.rel (0) target = $region13
    $region12: #{tpu_custom_call.1} parent=1 // pred_region
      _
    $region13: #{tpu_custom_call.1} parent=1 // pred_fallthru
      _
    // Predicated region
    $region14: #{tpu_custom_call.1} parent=1 // pred_check
      _
    $region15: #{tpu_custom_call.1} parent=1 // pred_check_branch
      %20 = sbr.rel (0) target = $region17
    $region16: #{tpu_custom_call.1} parent=1 // pred_region
      _
    $region17: #{tpu_custom_call.1} parent=1 // pred_fallthru
      _
    // Predicated region
    $region18: #{tpu_custom_call.1} parent=1 // pred_check
      _
    $region19: #{tpu_custom_call.1} parent=1 // pred_check_branch
      %22 = sbr.rel (0) target = $region21
    $region20: #{tpu_custom_call.1} parent=1 // pred_region
      _
    $region21: #{tpu_custom_call.1} parent=1 // pred_fallthru
      _
    // Predicated region
    $region22: #{tpu_custom_call.1} parent=1 // pred_check
      _
    $region23: #{tpu_custom_call.1} parent=1 // pred_check_branch
      %24 = sbr.rel (0) target = $region25
    $region24: #{tpu_custom_call.1} parent=1 // pred_region
      _
    $region25: #{tpu_custom_call.1} parent=1 // pred_fallthru
      _
    // Predicated region
    $region26: #{tpu_custom_call.1} parent=1 // pred_check
      _
    $region27: #{tpu_custom_call.1} parent=1 // pred_check_branch
      %26 = sbr.rel (0) target = $region29
    $region28: #{tpu_custom_call.1} parent=1 // pred_region
      _
    $region29: #{tpu_custom_call.1} parent=1 // pred_fallthru
      _
    %v29 = vld [vmem:[%s0] sm:$0xff]
    %v30 = vld [vmem:[%s0 + $0x8] sm:$0xff]
    %v31 = vld [vmem:[%s0 + $0x10] sm:$0xff]
    %v32 = vld [vmem:[%s0 + $0x18] sm:$0xff]
    %v33 = vld [vmem:[%s0 + $0x20] sm:$0xff]
    %v34 = vld [vmem:[%s0 + $0x28] sm:$0xff]
    %v35 = vld [vmem:[%s0 + $0x30] sm:$0xff]
    %v36 = vld [vmem:[%s0 + $0x38] sm:$0xff]
    %v37 = vlaneseq
    %v38 = vand.u32 %v37, 127
    %39 = vset.pattern.permute.xlu0 0
    %40 = vperm.xlu0 %39, %v29
    %v41 = vpop.permute.xlu0 %40
    %42 = vset.pattern.permute.xlu0 0
    %43 = vperm.xlu0 %42, %v30
    %v44 = vpop.permute.xlu0 %43
    %45 = vset.pattern.permute.xlu0 0
    %46 = vperm.xlu0 %45, %v31
    %v47 = vpop.permute.xlu0 %46
    %48 = vset.pattern.permute.xlu0 0
    %49 = vperm.xlu0 %48, %v32
    %v50 = vpop.permute.xlu0 %49
    %51 = vset.pattern.permute.xlu0 0
    %52 = vperm.xlu0 %51, %v33
    %v53 = vpop.permute.xlu0 %52
    %54 = vset.pattern.permute.xlu0 0
    %55 = vperm.xlu0 %54, %v34
    %v56 = vpop.permute.xlu0 %55
    %57 = vset.pattern.permute.xlu0 0
    %58 = vperm.xlu0 %57, %v35
    %v59 = vpop.permute.xlu0 %58
    %60 = vset.pattern.permute.xlu0 0
    %61 = vperm.xlu0 %60, %v36
    %v62 = vpop.permute.xlu0 %61
    %vm63 = vcmp.eq.s32.totalorder %v38, %v41
    %vm64 = vcmp.eq.s32.totalorder %v38, %v44
    %vm65 = vcmp.eq.s32.totalorder %v38, %v47
    %vm66 = vcmp.eq.s32.totalorder %v38, %v50
    %vm67 = vcmp.eq.s32.totalorder %v38, %v53
    %vm68 = vcmp.eq.s32.totalorder %v38, %v56
    %vm69 = vcmp.eq.s32.totalorder %v38, %v59
    %vm70 = vcmp.eq.s32.totalorder %v38, %v62
    %v71 = vsel %vm63, 1, 0
    %v72 = vsel %vm64, 1, 0
    %v73 = vsel %vm65, 1, 0
    %v74 = vsel %vm66, 1, 0
    %v75 = vsel %vm67, 1, 0
    %v76 = vsel %vm68, 1, 0
    %v77 = vsel %vm69, 1, 0
    %v78 = vsel %vm70, 1, 0
    %v79 = vcvt.s32.f32 %v71
    %v80 = vcvt.s32.f32 %v72
    %v81 = vcvt.s32.f32 %v73
    %v82 = vcvt.s32.f32 %v74
    %v83 = vcvt.s32.f32 %v75
    %v84 = vcvt.s32.f32 %v76
    %v85 = vcvt.s32.f32 %v77
    %v86 = vcvt.s32.f32 %v78
    %v87 = vpack.c.bf16 %v80, %v79
    %v88 = vpack.c.bf16 %v82, %v81
    %v89 = vpack.c.bf16 %v84, %v83
    %v90 = vpack.c.bf16 %v86, %v85
    %v91 = vld [vmem:[%s1] sm:$0xf]
    %v92 = vld [vmem:[%s1 + $0x4] sm:$0xf]
    %v93 = vld [vmem:[%s1 + $0x8] sm:$0xf]
    %v94 = vld [vmem:[%s1 + $0xc] sm:$0xf]
    %v95 = vld [vmem:[%s1 + $0x10] sm:$0xf]
    %v96 = vld [vmem:[%s1 + $0x14] sm:$0xf]
    %v97 = vld [vmem:[%s1 + $0x18] sm:$0xf]
    %v98 = vld [vmem:[%s1 + $0x1c] sm:$0xf]
    %v107 = vunpack.c.l.b16 %v91
    %v108 = vunpack.c.l.b16 %v92
    %v109 = vunpack.c.l.b16 %v93
    %v110 = vunpack.c.l.b16 %v94
    %v111 = vunpack.c.l.b16 %v95
    %v112 = vunpack.c.l.b16 %v96
    %v113 = vunpack.c.l.b16 %v97
    %v114 = vunpack.c.l.b16 %v98
    %v115 = vpack.c.b16 %v108, %v107
    %v116 = vpack.c.b16 %v110, %v109
    %v117 = vpack.c.b16 %v112, %v111
    %v118 = vpack.c.b16 %v114, %v113
    %vm123 = vcmask 523264
    %v125 = vsel %vm123, %v87, 0
    %v128 = vsel %vm123, %v88, 0
    %v131 = vsel %vm123, %v89, 0
    %v134 = vsel %vm123, %v90, 0
    %136 = vmatprep.subr.bf16.mxu0 0
    %137 = vmatpush1.bf16.msra.mxu0 0
    %138 = vmatprep.subr.bf16.mxu0 0
    %139 = vmatpush1.bf16.msra.mxu0 0
    %140 = vmatprep.subr.bf16.mxu0 0
    %141 = vmatpush1.bf16.msra.mxu0 0
    %142 = vmatprep.subr.bf16.mxu0 0
    %143 = vmatpush1.bf16.msra.mxu0 0
    %144 = vmatprep.subr.bf16.mxu0 0
    %145 = vmatpush1.bf16.msra.mxu0 %v118
    %146 = vmatprep.subr.bf16.mxu0 0
    %147 = vmatpush1.bf16.msra.mxu0 %v117
    %148 = vmatprep.subr.bf16.mxu0 0
    %149 = vmatpush1.bf16.msra.mxu0 %v116
    %150 = vmatprep.subr.bf16.mxu0 0
    %151 = vmatpush1.bf16.msra.mxu0 %v115
    %152 = vmatprep.subr.bf16.mxu0 0
    %153 = vmatpush2.bf16.msra.mxu0 0
    %154 = vmatprep.subr.bf16.mxu0 0
    %155 = vmatpush2.bf16.msra.mxu0 0
    %156 = vmatprep.subr.bf16.mxu0 0
    %157 = vmatpush2.bf16.msra.mxu0 0
    %158 = vmatprep.subr.bf16.mxu0 0
    %159 = vmatpush2.bf16.msra.mxu0 0
    %160 = vmatprep.subr.bf16.mxu0 0
    %161 = vmatpush2.bf16.msra.mxu0 0
    %162 = vmatprep.subr.bf16.mxu0 0
    %163 = vmatpush2.bf16.msra.mxu0 0
    %164 = vmatprep.subr.bf16.mxu0 0
    %165 = vmatpush2.bf16.msra.mxu0 0
    %166 = vmatprep.subr.bf16.mxu0 0
    %167 = vmatpush2.bf16.msra.mxu0 0
    %168 = vmatprep.mubr.bf16.mxu0 0
    %169 = vmatmul.mubr.bf16.gmra.mxu0 %v125
    %v170 = vpop.f32.mrf.mxu0
    %v171 = vadd.f32 0.0, %v170
    %v172 = vpop.f32.mrf.mxu0
    %v173 = vpop.f32.mrf.mxu0
    %v174 = vadd.f32 0.0, %v173
    %v175 = vpop.f32.mrf.mxu0
    %176 = vmatprep.mubr.bf16.mxu0 0
    %177 = vmatmul.mubr.bf16.gmra.mxu0 %v128
    %v178 = vpop.f32.mrf.mxu0
    %v179 = vadd.f32 0.0, %v178
    %v180 = vpop.f32.mrf.mxu0
    %v181 = vpop.f32.mrf.mxu0
    %v182 = vadd.f32 0.0, %v181
    %v183 = vpop.f32.mrf.mxu0
    %184 = vmatprep.mubr.bf16.mxu0 0
    %185 = vmatmul.mubr.bf16.gmra.mxu0 %v131
    %v186 = vpop.f32.mrf.mxu0
    %v187 = vadd.f32 0.0, %v186
    %v188 = vpop.f32.mrf.mxu0
    %v189 = vpop.f32.mrf.mxu0
    %v190 = vadd.f32 0.0, %v189
    %v191 = vpop.f32.mrf.mxu0
    %192 = vmatprep.mubr.bf16.mxu0 0
    %193 = vmatmul.mubr.bf16.gmra.mxu0 %v134
    %v194 = vpop.f32.mrf.mxu0
    %v195 = vadd.f32 0.0, %v194
    %v196 = vpop.f32.mrf.mxu0
    %v197 = vpop.f32.mrf.mxu0
    %v198 = vadd.f32 0.0, %v197
    %v199 = vpop.f32.mrf.mxu0
    %200 = vdwg.mxu0
    %v201 = vrot.slane %v171, 1
    %v202 = vrot.slane %v174, 1
    %v203 = vrot.slane %v179, 1
    %v204 = vrot.slane %v182, 1
    %v205 = vrot.slane %v187, 1
    %v206 = vrot.slane %v190, 1
    %v207 = vrot.slane %v195, 1
    %v208 = vrot.slane %v198, 1
    %v209 = vlaneseq
    %v210 = vshrl.u32 %v209, 7
    %vm211 = vcmp.lt.s32.totalorder %v210, 7
    %v212 = vsel %vm211, %v207, %v208
    %v213 = vsel %vm211, %v206, %v207
    %v214 = vsel %vm211, %v205, %v206
    %v215 = vsel %vm211, %v204, %v205
    %v216 = vsel %vm211, %v203, %v204
    %v217 = vsel %vm211, %v202, %v203
    %v218 = vsel %vm211, %v201, %v202
    %v219 = vsel %vm211, %v208, %v201
    %v220 = vrot.slane %v171, 2
    %v221 = vrot.slane %v174, 2
    %v222 = vrot.slane %v179, 2
    %v223 = vrot.slane %v182, 2
    %v224 = vrot.slane %v187, 2
    %v225 = vrot.slane %v190, 2
    %v226 = vrot.slane %v195, 2
    %v227 = vrot.slane %v198, 2
    %vm228 = vcmp.lt.s32.totalorder %v210, 6
    %v229 = vsel %vm228, %v226, %v227
    %v230 = vsel %vm228, %v225, %v226
    %v231 = vsel %vm228, %v224, %v225
    %v232 = vsel %vm228, %v223, %v224
    %v233 = vsel %vm228, %v222, %v223
    %v234 = vsel %vm228, %v221, %v222
    %v235 = vsel %vm228, %v220, %v221
    %v236 = vsel %vm228, %v227, %v220
    %v237 = vrot.slane %v171, 3
    %v238 = vrot.slane %v174, 3
    %v239 = vrot.slane %v179, 3
    %v240 = vrot.slane %v182, 3
    %v241 = vrot.slane %v187, 3
    %v242 = vrot.slane %v190, 3
    %v243 = vrot.slane %v195, 3
    %v244 = vrot.slane %v198, 3
    %vm245 = vcmp.lt.s32.totalorder %v210, 5
    %v246 = vsel %vm245, %v243, %v244
    %v247 = vsel %vm245, %v242, %v243
    %v248 = vsel %vm245, %v241, %v242
    %v249 = vsel %vm245, %v240, %v241
    %v250 = vsel %vm245, %v239, %v240
    %v251 = vsel %vm245, %v238, %v239
    %v252 = vsel %vm245, %v237, %v238
    %v253 = vsel %vm245, %v244, %v237
    %v254 = vrot.slane %v171, 4
    %v255 = vrot.slane %v174, 4
    %v256 = vrot.slane %v179, 4
    %v257 = vrot.slane %v182, 4
    %v258 = vrot.slane %v187, 4
    %v259 = vrot.slane %v190, 4
    %v260 = vrot.slane %v195, 4
    %v261 = vrot.slane %v198, 4
    %vm262 = vcmp.lt.s32.totalorder %v210, 4
    %v263 = vsel %vm262, %v260, %v261
    %v264 = vsel %vm262, %v259, %v260
    %v265 = vsel %vm262, %v258, %v259
    %v266 = vsel %vm262, %v257, %v258
    %v267 = vsel %vm262, %v256, %v257
    %v268 = vsel %vm262, %v255, %v256
    %v269 = vsel %vm262, %v254, %v255
    %v270 = vsel %vm262, %v261, %v254
    %v271 = vrot.slane %v171, 5
    %v272 = vrot.slane %v174, 5
    %v273 = vrot.slane %v179, 5
    %v274 = vrot.slane %v182, 5
    %v275 = vrot.slane %v187, 5
    %v276 = vrot.slane %v190, 5
    %v277 = vrot.slane %v195, 5
    %v278 = vrot.slane %v198, 5
    %vm279 = vcmp.lt.s32.totalorder %v210, 3
    %v280 = vsel %vm279, %v277, %v278
    %v281 = vsel %vm279, %v276, %v277
    %v282 = vsel %vm279, %v275, %v276
    %v283 = vsel %vm279, %v274, %v275
    %v284 = vsel %vm279, %v273, %v274
    %v285 = vsel %vm279, %v272, %v273
    %v286 = vsel %vm279, %v271, %v272
    %v287 = vsel %vm279, %v278, %v271
    %v288 = vpack.c.bf16 %v174, %v171
    %v289 = vpack.c.bf16 %v182, %v179
    %v290 = vpack.c.bf16 %v190, %v187
    %v291 = vpack.c.bf16 %v198, %v195
    %v292 = vpack.c.bf16 %v217, %v218
    %v293 = vpack.c.bf16 %v215, %v216
    %v294 = vpack.c.bf16 %v213, %v214
    %v295 = vpack.c.bf16 %v219, %v212
    %v296 = vpack.c.bf16 %v234, %v235
    %v297 = vpack.c.bf16 %v232, %v233
    %v298 = vpack.c.bf16 %v230, %v231
    %v299 = vpack.c.bf16 %v236, %v229
    %v300 = vpack.c.bf16 %v251, %v252
    %v301 = vpack.c.bf16 %v249, %v250
    %v302 = vpack.c.bf16 %v247, %v248
    %v303 = vpack.c.bf16 %v253, %v246
    %v304 = vpack.c.bf16 %v268, %v269
    %v305 = vpack.c.bf16 %v266, %v267
    %v306 = vpack.c.bf16 %v264, %v265
    %v307 = vpack.c.bf16 %v270, %v263
    %v308 = vpack.c.bf16 %v285, %v286
    %v309 = vpack.c.bf16 %v283, %v284
    %v310 = vpack.c.bf16 %v281, %v282
    %v311 = vpack.c.bf16 %v287, %v280
    %316 = vrot.lane.b32.xlu0 %v292, 16
    %v317 = vpop.permute.xlu0 %316
    %318 = vrot.lane.b32.xlu0 %v293, 16
    %v319 = vpop.permute.xlu0 %318
    %320 = vrot.lane.b32.xlu0 %v294, 16
    %v321 = vpop.permute.xlu0 %320
    %322 = vrot.lane.b32.xlu0 %v295, 16
    %v323 = vpop.permute.xlu0 %322
    %328 = vrot.lane.b32.xlu0 %v296, 32
    %v329 = vpop.permute.xlu0 %328
    %330 = vrot.lane.b32.xlu0 %v297, 32
    %v331 = vpop.permute.xlu0 %330
    %332 = vrot.lane.b32.xlu0 %v298, 32
    %v333 = vpop.permute.xlu0 %332
    %334 = vrot.lane.b32.xlu0 %v299, 32
    %v335 = vpop.permute.xlu0 %334
    %340 = vrot.lane.b32.xlu0 %v300, 48
    %v341 = vpop.permute.xlu0 %340
    %342 = vrot.lane.b32.xlu0 %v301, 48
    %v343 = vpop.permute.xlu0 %342
    %344 = vrot.lane.b32.xlu0 %v302, 48
    %v345 = vpop.permute.xlu0 %344
    %346 = vrot.lane.b32.xlu0 %v303, 48
    %v347 = vpop.permute.xlu0 %346
    %352 = vrot.lane.b32.xlu0 %v304, 64
    %v353 = vpop.permute.xlu0 %352
    %354 = vrot.lane.b32.xlu0 %v305, 64
    %v355 = vpop.permute.xlu0 %354
    %356 = vrot.lane.b32.xlu0 %v306, 64
    %v357 = vpop.permute.xlu0 %356
    %358 = vrot.lane.b32.xlu0 %v307, 64
    %v359 = vpop.permute.xlu0 %358
    %364 = vrot.lane.b32.xlu0 %v308, 80
    %v365 = vpop.permute.xlu0 %364
    %366 = vrot.lane.b32.xlu0 %v309, 80
    %v367 = vpop.permute.xlu0 %366
    %368 = vrot.lane.b32.xlu0 %v310, 80
    %v369 = vpop.permute.xlu0 %368
    %370 = vrot.lane.b32.xlu0 %v311, 80
    %v371 = vpop.permute.xlu0 %370
    %vm372 = vcmask 130048
    %v375 = vsel %vm372, %v288, %v317
    %v378 = vsel %vm372, %v289, %v319
    %v381 = vsel %vm372, %v290, %v321
    %v384 = vsel %vm372, %v291, %v323
    %vm385 = vcmask 261120
    %v387 = vsel %vm385, %v375, %v329
    %v389 = vsel %vm385, %v378, %v331
    %v391 = vsel %vm385, %v381, %v333
    %v393 = vsel %vm385, %v384, %v335
    %vm394 = vcmask 392192
    %v396 = vsel %vm394, %v387, %v341
    %v398 = vsel %vm394, %v389, %v343
    %v400 = vsel %vm394, %v391, %v345
    %v402 = vsel %vm394, %v393, %v347
    %v404 = vsel %vm123, %v396, %v353
    %v406 = vsel %vm123, %v398, %v355
    %v408 = vsel %vm123, %v400, %v357
    %v410 = vsel %vm123, %v402, %v359
    %vm411 = vcmask 654336
    %v413 = vsel %vm411, %v404, %v365
    %v415 = vsel %vm411, %v406, %v367
    %v417 = vsel %vm411, %v408, %v369
    %v419 = vsel %vm411, %v410, %v371
    %vm420 = vcmask 785408
    %v422 = vsel %vm420, %v413, 1065369472
    %v423 = vsel %vm420, %v415, 1065369472
    %v424 = vsel %vm420, %v417, 1065369472
    %v425 = vsel %vm420, %v419, 1065369472
    %v426 = vld [vmem:[%s2] sm:$0xff]
    %v427 = vld [vmem:[%s2 + $0x8] sm:$0xff]
    %v428 = vld [vmem:[%s2 + $0x10] sm:$0xff]
    %v429 = vld [vmem:[%s2 + $0x18] sm:$0xff]
    %v430 = vld [vmem:[%s2 + $0x20] sm:$0xff]
    %v431 = vld [vmem:[%s2 + $0x28] sm:$0xff]
    %v432 = vld [vmem:[%s2 + $0x30] sm:$0xff]
    %v433 = vld [vmem:[%s2 + $0x38] sm:$0xff]
    %v434 = vld [vmem:[%s2 + $0x40] sm:$0xff]
    %v435 = vld [vmem:[%s2 + $0x48] sm:$0xff]
    %v436 = vld [vmem:[%s2 + $0x50] sm:$0xff]
    %v437 = vld [vmem:[%s2 + $0x58] sm:$0xff]
    %v438 = vld [vmem:[%s2 + $0x60] sm:$0x11]
    %v452 = vunpack.c.l.b16 %v426
    %v453 = vunpack.c.h.b16 %v426
    %v454 = vunpack.c.l.b16 %v427
    %v455 = vunpack.c.h.b16 %v427
    %v456 = vunpack.c.l.b16 %v428
    %v457 = vunpack.c.h.b16 %v428
    %v458 = vunpack.c.l.b16 %v429
    %v459 = vunpack.c.h.b16 %v429
    %v460 = vunpack.c.l.b16 %v430
    %v461 = vunpack.c.h.b16 %v430
    %v462 = vunpack.c.l.b16 %v431
    %v463 = vunpack.c.h.b16 %v431
    %v464 = vunpack.c.l.b16 %v432
    %v465 = vunpack.c.h.b16 %v432
    %v466 = vunpack.c.l.b16 %v433
    %v467 = vunpack.c.h.b16 %v433
    %v468 = vunpack.c.l.b16 %v434
    %v469 = vunpack.c.h.b16 %v434
    %v470 = vunpack.c.l.b16 %v435
    %v471 = vunpack.c.h.b16 %v435
    %v472 = vunpack.c.l.b16 %v436
    %v473 = vunpack.c.h.b16 %v436
    %v474 = vunpack.c.l.b16 %v437
    %v475 = vunpack.c.h.b16 %v437
    %v476 = vunpack.c.l.b16 %v438
    %v477 = vunpack.c.h.b16 %v438
    %v478 = vpack.c.b16 %v454, %v452
    %v479 = vpack.c.b16 %v455, %v453
    %v480 = vpack.c.b16 %v458, %v456
    %v481 = vpack.c.b16 %v459, %v457
    %v482 = vpack.c.b16 %v462, %v460
    %v483 = vpack.c.b16 %v463, %v461
    %v484 = vpack.c.b16 %v466, %v464
    %v485 = vpack.c.b16 %v467, %v465
    %v486 = vpack.c.b16 %v470, %v468
    %v487 = vpack.c.b16 %v471, %v469
    %v488 = vpack.c.b16 %v474, %v472
    %v489 = vpack.c.b16 %v475, %v473
    %v490 = vpack.c.b16 %v476, %v476
    %v491 = vpack.c.b16 %v477, %v477
    %vm504 = vcmask 793600
    %v505 = vsel %vm504, %v422, 0
    %v507 = vsel %vm504, %v423, 0
    %v509 = vsel %vm504, %v424, 0
    %v511 = vsel %vm504, %v425, 0
    %vm513 = vcmask 1040384
    %v514 = vsel 0, 4294967295, 65535
    %v515 = vsel %vm513, %v514, 0
    %v517 = vand.u32 %v490, %v515
    %v520 = vand.u32 %v491, %v515
    %522 = vmatprep.subr.bf16.mxu0 0
    %523 = vmatpush1.bf16.msra.mxu0 0
    %524 = vmatprep.subr.bf16.mxu0 %v520
    %525 = vmatpush1.bf16.msra.mxu0 %v517
    %526 = vmatprep.subr.bf16.mxu0 %v489
    %527 = vmatpush1.bf16.msra.mxu0 %v488
    %528 = vmatprep.subr.bf16.mxu0 %v487
    %529 = vmatpush1.bf16.msra.mxu0 %v486
    %530 = vmatprep.subr.bf16.mxu0 %v485
    %531 = vmatpush1.bf16.msra.mxu0 %v484
    %532 = vmatprep.subr.bf16.mxu0 %v483
    %533 = vmatpush1.bf16.msra.mxu0 %v482
    %534 = vmatprep.subr.bf16.mxu0 %v481
    %535 = vmatpush1.bf16.msra.mxu0 %v480
    %536 = vmatprep.subr.bf16.mxu0 %v479
    %537 = vmatpush1.bf16.msra.mxu0 %v478
    %538 = vmatprep.subr.bf16.mxu0 0
    %539 = vmatpush2.bf16.msra.mxu0 0
    %540 = vmatprep.subr.bf16.mxu0 0
    %541 = vmatpush2.bf16.msra.mxu0 0
    %542 = vmatprep.subr.bf16.mxu0 0
    %543 = vmatpush2.bf16.msra.mxu0 0
    %544 = vmatprep.subr.bf16.mxu0 0
    %545 = vmatpush2.bf16.msra.mxu0 0
    %546 = vmatprep.subr.bf16.mxu0 0
    %547 = vmatpush2.bf16.msra.mxu0 0
    %548 = vmatprep.subr.bf16.mxu0 0
    %549 = vmatpush2.bf16.msra.mxu0 0
    %550 = vmatprep.subr.bf16.mxu0 0
    %551 = vmatpush2.bf16.msra.mxu0 0
    %552 = vmatprep.subr.bf16.mxu0 0
    %553 = vmatpush2.bf16.msra.mxu0 0
    %554 = vmatprep.mubr.bf16.mxu0 0
    %555 = vmatmul.mubr.bf16.gmra.mxu0 %v505
    %v556 = vpop.f32.mrf.mxu0
    %v557 = vadd.f32 0.0, %v556
    %v558 = vpop.f32.mrf.mxu0
    %v559 = vadd.f32 0.0, %v558
    %v560 = vpop.f32.mrf.mxu0
    %v561 = vadd.f32 0.0, %v560
    %v562 = vpop.f32.mrf.mxu0
    %v563 = vadd.f32 0.0, %v562
    %564 = vmatprep.mubr.bf16.mxu0 0
    %565 = vmatmul.mubr.bf16.gmra.mxu0 %v507
    %v566 = vpop.f32.mrf.mxu0
    %v567 = vadd.f32 0.0, %v566
    %v568 = vpop.f32.mrf.mxu0
    %v569 = vadd.f32 0.0, %v568
    %v570 = vpop.f32.mrf.mxu0
    %v571 = vadd.f32 0.0, %v570
    %v572 = vpop.f32.mrf.mxu0
    %v573 = vadd.f32 0.0, %v572
    %574 = vmatprep.mubr.bf16.mxu0 0
    %575 = vmatmul.mubr.bf16.gmra.mxu0 %v509
    %v576 = vpop.f32.mrf.mxu0
    %v577 = vadd.f32 0.0, %v576
    %v578 = vpop.f32.mrf.mxu0
    %v579 = vadd.f32 0.0, %v578
    %v580 = vpop.f32.mrf.mxu0
    %v581 = vadd.f32 0.0, %v580
    %v582 = vpop.f32.mrf.mxu0
    %v583 = vadd.f32 0.0, %v582
    %584 = vmatprep.mubr.bf16.mxu0 0
    %585 = vmatmul.mubr.bf16.gmra.mxu0 %v511
    %v586 = vpop.f32.mrf.mxu0
    %v587 = vadd.f32 0.0, %v586
    %v588 = vpop.f32.mrf.mxu0
    %v589 = vadd.f32 0.0, %v588
    %v590 = vpop.f32.mrf.mxu0
    %v591 = vadd.f32 0.0, %v590
    %v592 = vpop.f32.mrf.mxu0
    %v593 = vadd.f32 0.0, %v592
    %594 = vdwg.mxu0
    %v595 = vmax.f32 %v557, 0.0
    %v596 = vmax.f32 %v559, 0.0
    %v597 = vmax.f32 %v561, 0.0
    %v598 = vmax.f32 %v563, 0.0
    %v599 = vmax.f32 %v567, 0.0
    %v600 = vmax.f32 %v569, 0.0
    %v601 = vmax.f32 %v571, 0.0
    %v602 = vmax.f32 %v573, 0.0
    %v603 = vmax.f32 %v577, 0.0
    %v604 = vmax.f32 %v579, 0.0
    %v605 = vmax.f32 %v581, 0.0
    %v606 = vmax.f32 %v583, 0.0
    %v607 = vmax.f32 %v587, 0.0
    %v608 = vmax.f32 %v589, 0.0
    %v609 = vmax.f32 %v591, 0.0
    %v610 = vmax.f32 %v593, 0.0
    %v611 = vadd.s32 %v210, 8
    %v612 = vadd.s32 %v38, 128
    %vm613 = vcmp.ge.s32.totalorder %v38, 32
    %vm614 = vcmp.ge.s32.totalorder %v612, 32
    %v615 = vsel %vm613, 13, 14
    %v616 = vsel %vm614, 13, 14
    %vm617 = vcmp.ge.s32.totalorder %v38, 64
    %vm618 = vcmp.ge.s32.totalorder %v612, 64
    %v619 = vsel %vm617, 12, %v615
    %v620 = vsel %vm618, 12, %v616
    %vm621 = vcmp.ge.s32.totalorder %v38, 96
    %vm622 = vcmp.ge.s32.totalorder %v612, 96
    %v623 = vsel %vm621, 11, %v619
    %v624 = vsel %vm622, 11, %v620
    %vm625 = vcmp.ge.s32.totalorder %v38, 128
    %vm626 = vcmp.ge.s32.totalorder %v612, 128
    %v627 = vsel %vm625, 10, %v623
    %v628 = vsel %vm626, 10, %v624
    %vm629 = vcmp.le.s32.totalorder %v210, %v627
    %vm630 = vcmp.le.s32.totalorder %v210, %v628
    %vm631 = vcmp.le.s32.totalorder %v611, %v627
    %vm632 = vcmp.le.s32.totalorder %v611, %v628
    %v633 = vsel %vm629, 1, 0
    %v634 = vsel %vm630, 1, 0
    %v635 = vsel %vm631, 1, 0
    %v636 = vsel %vm632, 1, 0
    %v637 = vcvt.s32.f32 %v633
    %v638 = vcvt.s32.f32 %v634
    %v639 = vcvt.s32.f32 %v635
    %v640 = vcvt.s32.f32 %v636
    %v641 = vmul.f32 %v595, %v637
    %v642 = vmul.f32 %v596, %v638
    %v643 = vmul.f32 %v597, %v639
    %v644 = vmul.f32 %v598, %v640
    %v645 = vmul.f32 %v599, %v637
    %v646 = vmul.f32 %v600, %v638
    %v647 = vmul.f32 %v601, %v639
    %v648 = vmul.f32 %v602, %v640
    %v649 = vmul.f32 %v603, %v637
    %v650 = vmul.f32 %v604, %v638
    %v651 = vmul.f32 %v605, %v639
    %v652 = vmul.f32 %v606, %v640
    %v653 = vmul.f32 %v607, %v637
    %v654 = vmul.f32 %v608, %v638
    %v655 = vmul.f32 %v609, %v639
    %v656 = vmul.f32 %v610, %v640
    %v657 = vmax.f32 %v641, %v643
    %v658 = vrot.slane %v657, 4
    %v659 = vmax.f32 %v657, %v658
    %v660 = vrot.slane %v659, 2
    %v661 = vmax.f32 %v659, %v660
    %v662 = vrot.slane %v661, 1
    %v663 = vmax.f32 %v661, %v662
    %v664 = vsel %vm385, %v642, -inf
    %v665 = vsel %vm385, %v644, -inf
    %v666 = vmax.f32 %v664, %v665
    %v667 = vrot.slane %v666, 4
    %v668 = vmax.f32 %v666, %v667
    %v669 = vrot.slane %v668, 2
    %v670 = vmax.f32 %v668, %v669
    %v671 = vrot.slane %v670, 1
    %v672 = vmax.f32 %v670, %v671
    %v673 = vmax.f32 %v645, %v647
    %v674 = vrot.slane %v673, 4
    %v675 = vmax.f32 %v673, %v674
    %v676 = vrot.slane %v675, 2
    %v677 = vmax.f32 %v675, %v676
    %v678 = vrot.slane %v677, 1
    %v679 = vmax.f32 %v677, %v678
    %v680 = vsel %vm385, %v646, -inf
    %v681 = vsel %vm385, %v648, -inf
    %v682 = vmax.f32 %v680, %v681
    %v683 = vrot.slane %v682, 4
    %v684 = vmax.f32 %v682, %v683
    %v685 = vrot.slane %v684, 2
    %v686 = vmax.f32 %v684, %v685
    %v687 = vrot.slane %v686, 1
    %v688 = vmax.f32 %v686, %v687
    %v689 = vmax.f32 %v649, %v651
    %v690 = vrot.slane %v689, 4
    %v691 = vmax.f32 %v689, %v690
    %v692 = vrot.slane %v691, 2
    %v693 = vmax.f32 %v691, %v692
    %v694 = vrot.slane %v693, 1
    %v695 = vmax.f32 %v693, %v694
    %v696 = vsel %vm385, %v650, -inf
    %v697 = vsel %vm385, %v652, -inf
    %v698 = vmax.f32 %v696, %v697
    %v699 = vrot.slane %v698, 4
    %v700 = vmax.f32 %v698, %v699
    %v701 = vrot.slane %v700, 2
    %v702 = vmax.f32 %v700, %v701
    %v703 = vrot.slane %v702, 1
    %v704 = vmax.f32 %v702, %v703
    %v705 = vmax.f32 %v653, %v655
    %v706 = vrot.slane %v705, 4
    %v707 = vmax.f32 %v705, %v706
    %v708 = vrot.slane %v707, 2
    %v709 = vmax.f32 %v707, %v708
    %v710 = vrot.slane %v709, 1
    %v711 = vmax.f32 %v709, %v710
    %v712 = vsel %vm385, %v654, -inf
    %v713 = vsel %vm385, %v656, -inf
    %v714 = vmax.f32 %v712, %v713
    %v715 = vrot.slane %v714, 4
    %v716 = vmax.f32 %v714, %v715
    %v717 = vrot.slane %v716, 2
    %v718 = vmax.f32 %v716, %v717
    %v719 = vrot.slane %v718, 1
    %v720 = vmax.f32 %v718, %v719
    %v721 = vpack.c.bf16 %v663, %v663
    %v722 = vpack.c.bf16 %v672, %v672
    %v723 = vpack.c.bf16 %v679, %v679
    %v724 = vpack.c.bf16 %v688, %v688
    %v725 = vpack.c.bf16 %v695, %v695
    %v726 = vpack.c.bf16 %v704, %v704
    %v727 = vpack.c.bf16 %v711, %v711
    %v728 = vpack.c.bf16 %v720, %v720
    %v729 = vld [vmem:[%s3] sm:$0xf]
    %v730 = vld [vmem:[%s3 + $0x4] sm:$0xf]
    %v731 = vld [vmem:[%s3 + $0x8] sm:$0xf]
    %v732 = vld [vmem:[%s3 + $0xc] sm:$0xf]
    %v733 = vld [vmem:[%s3 + $0x10] sm:$0xf]
    %v734 = vld [vmem:[%s3 + $0x14] sm:$0xf]
    %v735 = vld [vmem:[%s3 + $0x18] sm:$0xf]
    %v736 = vld [vmem:[%s3 + $0x1c] sm:$0xf]
    %v737 = vld [vmem:[%s3 + $0x20] sm:$0xf]
    %v738 = vld [vmem:[%s3 + $0x24] sm:$0xf]
    %v739 = vld [vmem:[%s3 + $0x28] sm:$0xf]
    %v740 = vld [vmem:[%s3 + $0x2c] sm:$0xf]
    %v741 = vld [vmem:[%s3 + $0x30] sm:$0xf]
    %v742 = vld [vmem:[%s3 + $0x34] sm:$0xf]
    %v743 = vld [vmem:[%s3 + $0x38] sm:$0xf]
    %v744 = vld [vmem:[%s3 + $0x3c] sm:$0xf]
    %v745 = vld [vmem:[%s3 + $0x40] sm:$0xf]
    %v746 = vld [vmem:[%s3 + $0x44] sm:$0xf]
    %v747 = vld [vmem:[%s3 + $0x48] sm:$0xf]
    %v748 = vld [vmem:[%s3 + $0x4c] sm:$0xf]
    %v749 = vld [vmem:[%s4] sm:$0x1]
    %v751 = vlaneseq
    %v752 = vshrl.u32 %v751, 7
    %v753 = vsub.s32 0, %v752
    %v754 = vrot.slane %v749, %v753
    %v764 = vunpack.c.l.b16 %v721
    %v765 = vunpack.c.l.b16 %v722
    %v766 = vunpack.c.l.b16 %v723
    %v767 = vunpack.c.l.b16 %v724
    %v768 = vunpack.c.l.b16 %v725
    %v769 = vunpack.c.l.b16 %v726
    %v770 = vunpack.c.l.b16 %v727
    %v771 = vunpack.c.l.b16 %v728
    %vm772 = vcmask 1041409
    %v773 = vsel %vm772, %v766, %v764
    %vm774 = vcmask 1042434
    %v775 = vsel %vm774, %v768, %v773
    %vm776 = vcmask 1043459
    %v777 = vsel %vm776, %v770, %v775
    %v778 = vsel %vm772, %v767, %v765
    %v779 = vsel %vm774, %v769, %v778
    %v780 = vsel %vm776, %v771, %v779
    %v781 = vpack.c.b16 %v777, %v777
    %v782 = vpack.c.b16 %v780, %v780
    %v804 = vunpack.c.l.b16 %v729
    %v805 = vunpack.c.l.b16 %v730
    %v806 = vunpack.c.l.b16 %v731
    %v807 = vunpack.c.l.b16 %v732
    %v808 = vunpack.c.l.b16 %v733
    %v809 = vunpack.c.l.b16 %v734
    %v810 = vunpack.c.l.b16 %v735
    %v811 = vunpack.c.l.b16 %v736
    %v812 = vunpack.c.l.b16 %v737
    %v813 = vunpack.c.l.b16 %v738
    %v814 = vunpack.c.l.b16 %v739
    %v815 = vunpack.c.l.b16 %v740
    %v816 = vunpack.c.l.b16 %v741
    %v817 = vunpack.c.l.b16 %v742
    %v818 = vunpack.c.l.b16 %v743
    %v819 = vunpack.c.l.b16 %v744
    %v820 = vunpack.c.l.b16 %v745
    %v821 = vunpack.c.l.b16 %v746
    %v822 = vunpack.c.l.b16 %v747
    %v823 = vunpack.c.l.b16 %v748
    %v824 = vpack.c.b16 %v805, %v804
    %v825 = vpack.c.b16 %v807, %v806
    %v826 = vpack.c.b16 %v809, %v808
    %v827 = vpack.c.b16 %v811, %v810
    %v828 = vpack.c.b16 %v813, %v812
    %v829 = vpack.c.b16 %v815, %v814
    %v830 = vpack.c.b16 %v817, %v816
    %v831 = vpack.c.b16 %v819, %v818
    %v832 = vpack.c.b16 %v821, %v820
    %v833 = vpack.c.b16 %v823, %v822
    %v845 = vsel %vm385, %v782, 0
    %847 = vmatprep.subr.bf16.mxu0 0
    %848 = vmatpush1.bf16.msra.mxu0 %v831
    %849 = vmatprep.subr.bf16.mxu0 0
    %850 = vmatpush1.bf16.msra.mxu0 %v830
    %851 = vmatprep.subr.bf16.mxu0 0
    %852 = vmatpush1.bf16.msra.mxu0 %v829
    %853 = vmatprep.subr.bf16.mxu0 0
    %854 = vmatpush1.bf16.msra.mxu0 %v828
    %855 = vmatprep.subr.bf16.mxu0 0
    %856 = vmatpush1.bf16.msra.mxu0 %v827
    %857 = vmatprep.subr.bf16.mxu0 0
    %858 = vmatpush1.bf16.msra.mxu0 %v826
    %859 = vmatprep.subr.bf16.mxu0 0
    %860 = vmatpush1.bf16.msra.mxu0 %v825
    %861 = vmatprep.subr.bf16.mxu0 0
    %862 = vmatpush1.bf16.msra.mxu0 %v824
    %863 = vmatprep.subr.bf16.mxu0 0
    %864 = vmatpush2.bf16.msra.mxu0 0
    %865 = vmatprep.subr.bf16.mxu0 0
    %866 = vmatpush2.bf16.msra.mxu0 0
    %867 = vmatprep.subr.bf16.mxu0 0
    %868 = vmatpush2.bf16.msra.mxu0 0
    %869 = vmatprep.subr.bf16.mxu0 0
    %870 = vmatpush2.bf16.msra.mxu0 0
    %871 = vmatprep.subr.bf16.mxu0 0
    %872 = vmatpush2.bf16.msra.mxu0 0
    %873 = vmatprep.subr.bf16.mxu0 0
    %874 = vmatpush2.bf16.msra.mxu0 0
    %875 = vmatprep.subr.bf16.mxu0 0
    %876 = vmatpush2.bf16.msra.mxu0 %v833
    %877 = vmatprep.subr.bf16.mxu0 0
    %878 = vmatpush2.bf16.msra.mxu0 %v832
    %879 = vmatprep.mubr.bf16.mxu0 %v845
    %880 = vmatmul.mubr.bf16.gmra.mxu0 %v781
    %v881 = vpop.f32.mrf.mxu0
    %v882 = vadd.f32 %v754, %v881
    %v883 = vpop.f32.mrf.mxu0
    %v884 = vpop.f32.mrf.mxu0
    %v885 = vpop.f32.mrf.mxu0
    %886 = vdwg.mxu0
    %v887 = vmax.f32 %v882, 0.0
    %v888 = vpack.c.bf16 %v887, %v887
    %v889 = vld [vmem:[%s5] sm:$0xf]
    %v890 = vld [vmem:[%s5 + $0x4] sm:$0xf]
    %v891 = vld [vmem:[%s5 + $0x8] sm:$0xf]
    %v892 = vld [vmem:[%s5 + $0xc] sm:$0xf]
    %v893 = vld [vmem:[%s6] sm:$0x1]
    %v895 = vlaneseq
    %v896 = vshrl.u32 %v895, 7
    %v897 = vsub.s32 0, %v896
    %v898 = vrot.slane %v893, %v897
    %v904 = vunpack.c.l.b16 %v889
    %v905 = vunpack.c.l.b16 %v890
    %v906 = vunpack.c.l.b16 %v891
    %v907 = vunpack.c.l.b16 %v892
    %v908 = vpack.c.b16 %v905, %v904
    %v909 = vpack.c.b16 %v907, %v906
    %v913 = vsel %vm385, %v888, 0
    %915 = vmatprep.subr.bf16.mxu0 0
    %916 = vmatpush1.bf16.msra.mxu0 0
    %917 = vmatprep.subr.bf16.mxu0 0
    %918 = vmatpush1.bf16.msra.mxu0 0
    %919 = vmatprep.subr.bf16.mxu0 0
    %920 = vmatpush1.bf16.msra.mxu0 0
    %921 = vmatprep.subr.bf16.mxu0 0
    %922 = vmatpush1.bf16.msra.mxu0 0
    %923 = vmatprep.subr.bf16.mxu0 0
    %924 = vmatpush1.bf16.msra.mxu0 0
    %925 = vmatprep.subr.bf16.mxu0 0
    %926 = vmatpush1.bf16.msra.mxu0 0
    %927 = vmatprep.subr.bf16.mxu0 0
    %928 = vmatpush1.bf16.msra.mxu0 %v909
    %929 = vmatprep.subr.bf16.mxu0 0
    %930 = vmatpush1.bf16.msra.mxu0 %v908
    %931 = vmatprep.subr.bf16.mxu0 0
    %932 = vmatpush2.bf16.msra.mxu0 0
    %933 = vmatprep.subr.bf16.mxu0 0
    %934 = vmatpush2.bf16.msra.mxu0 0
    %935 = vmatprep.subr.bf16.mxu0 0
    %936 = vmatpush2.bf16.msra.mxu0 0
    %937 = vmatprep.subr.bf16.mxu0 0
    %938 = vmatpush2.bf16.msra.mxu0 0
    %939 = vmatprep.subr.bf16.mxu0 0
    %940 = vmatpush2.bf16.msra.mxu0 0
    %941 = vmatprep.subr.bf16.mxu0 0
    %942 = vmatpush2.bf16.msra.mxu0 0
    %943 = vmatprep.subr.bf16.mxu0 0
    %944 = vmatpush2.bf16.msra.mxu0 0
    %945 = vmatprep.subr.bf16.mxu0 0
    %946 = vmatpush2.bf16.msra.mxu0 0
    %947 = vmatprep.mubr.bf16.mxu0 0
    %948 = vmatmul.mubr.bf16.gmra.mxu0 %v913
    %v949 = vpop.f32.mrf.mxu0
    %v950 = vadd.f32 %v898, %v949
    %v951 = vpop.f32.mrf.mxu0
    %v952 = vpop.f32.mrf.mxu0
    %v953 = vpop.f32.mrf.mxu0
    %954 = vdwg.mxu0
    %955 = vst [vmem:[#allocation2] sm:$0xf] %v950
    // Predicated region
    $region30: #{tpu_custom_call.1} parent=1 // pred_check
      _
    $region31: #{tpu_custom_call.1} parent=1 // pred_check_branch
      %957 = sbr.rel (0) target = $region33
    $region32: #{tpu_custom_call.1} parent=1 // pred_region
      %s959 = ssub.s32 64, 64
      %960 = vsyncadd [#allocation3], %s959
      %s962 = sshll.u32 [#allocation2], 4
      %s963 = int_to_ptr.vmem [resolvable:$true] %s962
      %965 = dma.vmem_to_hbm [thread:$0]  %s963, 64, %s7, [#allocation3]
    $region33: #{tpu_custom_call.1} parent=1 // pred_fallthru
      _
    // Predicated region
    $region34: #{tpu_custom_call.1} parent=1 // pred_check
      _
    $region35: #{tpu_custom_call.1} parent=1 // pred_check_branch
      %967 = sbr.rel (0) target = $region37
    $region36: #{tpu_custom_call.1} parent=1 // pred_region
      %968 = dma.done [#allocation3], 64
    $region37: #{tpu_custom_call.1} parent=1 // pred_fallthru
      _
    %969 = vsyncpa [#allocation3], 1

</llo_original>
